<compile_context>
chip_gen: v7x
topology: tpu7x:2x2x1
jax: 0.10.0
libtpu: 0.0.40
codegen_flags: <defaults>
</compile_context>

<pallas_src>
import jax
import jax.numpy as jnp
from jax import lax
from jax.experimental import pallas as pl
from jax.experimental.pallas import tpu as pltpu


# --------------------------- per-generation budgets ---------------------------

def _tpu_budget():
    kind = ""
    try:
        kind = jax.devices()[0].device_kind.lower()
    except Exception:
        pass
    if "v7" in kind or "7x" in kind:
        return 48 * 1024 * 1024, 256      # v7x: 64 MiB physical VMEM -> stay conservative
    if "v5" in kind or "v6" in kind:
        return 96 * 1024 * 1024, 512      # v5e/v6e: 128 MiB physical VMEM, bigger row tiles
    return 64 * 1024 * 1024, 256          # unknown: middle ground


_VMEM_LIMIT, _ROW_TILE_TARGET = _tpu_budget()


def _mosaic_params(semantics):
    return pltpu.CompilerParams(dimension_semantics=semantics,
                                vmem_limit_bytes=_VMEM_LIMIT)


# ---------------- single-buffered resident-weight BlockSpecs (probed) ----------------

_BUFFERED1 = None


def _buffered1_supported():
    """Probe once whether pipeline_mode=pl.Buffered(1) is accepted by this JAX/Mosaic."""
    global _BUFFERED1
    if _BUFFERED1 is not None:
        return _BUFFERED1
    try:
        def _probe(x_ref, o_ref):
            o_ref[...] = x_ref[...]
        spec = pl.BlockSpec((8, 128), lambda i: (0, 0), pipeline_mode=pl.Buffered(1))
        out = pl.pallas_call(
            _probe,
            grid=(2,),
            in_specs=[spec],
            out_specs=pl.BlockSpec((8, 128), lambda i: (0, 0)),
            out_shape=jax.ShapeDtypeStruct((8, 128), jnp.float32),
        )(jnp.zeros((8, 128), jnp.float32))
        jax.block_until_ready(out)
        _BUFFERED1 = True
    except Exception:
        _BUFFERED1 = False
    return _BUFFERED1


def _resident_spec(block_shape):
    """Constant-index_map (weight) block: no double buffering when supported."""
    nd = len(block_shape)
    imap = lambda *_: (0,) * nd
    if _buffered1_supported():
        return pl.BlockSpec(block_shape, imap, pipeline_mode=pl.Buffered(1))
    return pl.BlockSpec(block_shape, imap)


# --------------------------- fused Pallas kernels ---------------------------

def _ln_qkv_kernel(x_ref, g_ref, wqkv_ref, o_ref):
    # T5LayerNorm (RMS, eps=1e-6, no mean subtraction) fused with the QKV projection.
    x = x_ref[...].astype(jnp.float32)                        # (TM, D)
    var = jnp.mean(x * x, axis=-1, keepdims=True)
    normed = (x * lax.rsqrt(var + 1e-6) * g_ref[...]).astype(jnp.bfloat16)
    o_ref[...] = jnp.dot(
        normed, wqkv_ref[...], preferred_element_type=jnp.float32
    ).astype(o_ref.dtype)


def ln_qkv(x, g, wqkv, tm):
    n, d = x.shape
    p = wqkv.shape[1]
    return pl.pallas_call(
        _ln_qkv_kernel,
        grid=(pl.cdiv(n, tm),),
        in_specs=[
            pl.BlockSpec((tm, d), lambda i: (i, 0)),
            _resident_spec((1, d)),
            _resident_spec((d, p)),
        ],
        out_specs=pl.BlockSpec((tm, p), lambda i: (i, 0)),
        out_shape=jax.ShapeDtypeStruct((n, p), jnp.bfloat16),
        compiler_params=_mosaic_params(("parallel",)),
    )(x, g.reshape(1, d), wqkv)


def _attn_ffn_kernel(q_ref, k_ref, v_ref, bias_ref, mask_ref, x_ref,
                     wo_ref, g2_ref, wi_ref, woff_ref, o_ref, acc_ref):
    # grid = (batch b: "parallel", head h: "arbitrary"/reduction)
    # Per head: scores = q @ k^T + rel_bias_h + mask  (T5: no 1/sqrt(dk) scale),
    # softmax, ctx = p @ v, acc += ctx @ wo_h.  acc starts from the residual.
    # On the last head: second RMSNorm + wi -> ReLU -> wo_ff + residual, one store.
    h = pl.program_id(1)
    last_h = pl.num_programs(1) - 1

    @pl.when(h == 0)
    def _init():
        acc_ref[...] = x_ref[0].astype(jnp.float32)           # residual, f32 accumulate

    q = q_ref[0, 0, 0]                                        # (S, dk) bf16
    k = k_ref[0, 0, 0]
    v = v_ref[0, 0, 0]
    scores = lax.dot_general(                                 # (S, S) f32, no k.T copy
        q, k, (((1,), (1,)), ((), ())), preferred_element_type=jnp.float32)
    scores = scores + bias_ref[0].astype(jnp.float32) + mask_ref[0]
    scores = scores - jnp.max(scores, axis=-1, keepdims=True)
    p = jnp.exp(scores)
    p = p * pl.reciprocal(jnp.sum(p, axis=-1, keepdims=True), approx=True)
    ctx = jnp.dot(p.astype(jnp.bfloat16), v, preferred_element_type=jnp.float32)
    acc_ref[...] += jnp.dot(ctx.astype(jnp.bfloat16), wo_ref[0],
                            preferred_element_type=jnp.float32)

    @pl.when(h == last_h)
    def _ffn_and_store():
        y = acc_ref[...]                                      # (S, D) f32, attn sublayer out
        var = jnp.mean(y * y, axis=-1, keepdims=True)
        normed = (y * lax.rsqrt(var + 1e-6) * g2_ref[...]).astype(jnp.bfloat16)
        hmid = jnp.dot(normed, wi_ref[...], preferred_element_type=jnp.float32)
        hmid = jnp.maximum(hmid, 0.0).astype(jnp.bfloat16)
        y = y + jnp.dot(hmid, woff_ref[...], preferred_element_type=jnp.float32)
        o_ref[0] = y.astype(o_ref.dtype)                      # D-wide lane-dense store


def attention_ffn(qkv5, pos_bias, mask_bias, x_res, wo3, g2, wi, wo_ff):
    """qkv5: (3,B,H,S,dk) bf16; pos_bias: (H,S,S) bf16; mask_bias: (B,1,S) f32;
    x_res: (B,S,D) bf16; wo3: (H,dk,D) bf16 -> new residual (B,S,D) bf16."""
    _, B, H, S, dk = qkv5.shape
    D = x_res.shape[-1]
    F = wi.shape[1]
    return pl.pallas_call(
        _attn_ffn_kernel,
        grid=(B, H),
        in_specs=[
            pl.BlockSpec((1, 1, 1, S, dk), lambda b, h: (0, b, h, 0, 0)),   # q
            pl.BlockSpec((1, 1, 1, S, dk), lambda b, h: (1, b, h, 0, 0)),   # k
            pl.BlockSpec((1, 1, 1, S, dk), lambda b, h: (2, b, h, 0, 0)),   # v
            pl.BlockSpec((1, S, S), lambda b, h: (h, 0, 0)),                # rel bias (bf16)
            pl.BlockSpec((1, 1, S), lambda b, h: (b, 0, 0)),                # mask bias
            pl.BlockSpec((1, S, D), lambda b, h: (b, 0, 0)),                # residual
            pl.BlockSpec((1, dk, D), lambda b, h: (h, 0, 0)),               # wo per head
            _resident_spec((1, D)),                                         # gamma2
            _resident_spec((D, F)),                                         # wi
            _resident_spec((F, D)),                                         # wo_ff
        ],
        out_specs=pl.BlockSpec((1, S, D), lambda b, h: (b, 0, 0)),
        out_shape=jax.ShapeDtypeStruct((B, S, D), jnp.bfloat16),
        scratch_shapes=[pltpu.VMEM((S, D), jnp.float32)],
        compiler_params=_mosaic_params(("parallel", "arbitrary")),
    )(qkv5, qkv5, qkv5, pos_bias, mask_bias, x_res, wo3, g2.reshape(1, D), wi, wo_ff)


def _final_head_kernel(x_ref, g_ref, wd_ref, bd_ref, wo_ref, bo_ref, o_ref):
    # Final encoder RMSNorm + T5ClassificationHead: dense -> tanh -> out_proj.
    # Output lane dim padded to 128 for a lane-dense store (sliced in the wrapper).
    x = x_ref[...].astype(jnp.float32)
    var = jnp.mean(x * x, axis=-1, keepdims=True)
    normed = (x * lax.rsqrt(var + 1e-6) * g_ref[...]).astype(jnp.bfloat16)
    h = jnp.dot(normed, wd_ref[...], preferred_element_type=jnp.float32) + bd_ref[...]
    h = jnp.tanh(h).astype(jnp.bfloat16)
    o_ref[...] = jnp.dot(h, wo_ref[...], preferred_element_type=jnp.float32) + bo_ref[...]


def final_norm_head(x, g, wd, bd, wo_pad, bo_pad, tm):
    n, d = x.shape
    lpad = wo_pad.shape[1]
    return pl.pallas_call(
        _final_head_kernel,
        grid=(pl.cdiv(n, tm),),
        in_specs=[
            pl.BlockSpec((tm, d), lambda i: (i, 0)),
            _resident_spec((1, d)),
            _resident_spec((d, d)),
            _resident_spec((1, d)),
            _resident_spec((d, lpad)),
            _resident_spec((1, lpad)),
        ],
        out_specs=pl.BlockSpec((tm, lpad), lambda i: (i, 0)),
        out_shape=jax.ShapeDtypeStruct((n, lpad), jnp.float32),
        compiler_params=_mosaic_params(("parallel",)),
    )(x, g.reshape(1, d), wd, bd.reshape(1, d), wo_pad, bo_pad.reshape(1, lpad))


# --------------------------- JAX glue (index math / reshapes) ---------------------------

def _relative_position_bucket(relative_position, num_buckets=32, max_distance=128):
    # Bidirectional bucketing (encoder), matches HF T5Attention._relative_position_bucket.
    num_buckets = num_buckets // 2
    relative_buckets = jnp.where(relative_position > 0, num_buckets, 0)
    relative_position = jnp.abs(relative_position)
    max_exact = num_buckets // 2
    is_small = relative_position < max_exact
    rel_pos_f = jnp.maximum(relative_position, 1).astype(jnp.float32)
    rel_if_large = max_exact + (
        jnp.log(rel_pos_f / max_exact)
        / jnp.log(max_distance / max_exact)
        * (num_buckets - max_exact)
    ).astype(jnp.int32)
    rel_if_large = jnp.minimum(rel_if_large, num_buckets - 1)
    return relative_buckets + jnp.where(is_small, relative_position, rel_if_large)


def forward(params, input_ids, attention_mask):
    B, S = input_ids.shape
    D = params["d_model"]
    H = params["num_heads"]
    dk = params["d_kv"]
    N = B * S
    # Row tile: never degrades toward 8; non-divisible N handled by cdiv boundary blocks.
    tm = min(N, _ROW_TILE_TARGET)

    # token embedding (integer gather — plain JAX glue); residual stream is bf16
    hidden = params["embed"][input_ids].astype(jnp.bfloat16)            # (B, S, D)

    # relative position bias (layer 0, shared across layers AND batch), built once,
    # directly in (H, S, S) bf16 — no (S,S,H) f32 transpose materialization.
    rel_pos = jnp.arange(S)[None, :] - jnp.arange(S)[:, None]           # memory - context
    buckets = _relative_position_bucket(
        rel_pos, params["num_buckets"], params["max_distance"])
    pos_bias = params["rel_bias"].T[:, buckets].astype(jnp.bfloat16)    # (H, S, S)

    # additive attention-mask bias, (B, 1, S) f32 — applied inside the attention kernel
    mask_bias = (
        (1.0 - attention_mask.astype(jnp.float32)) * jnp.finfo(jnp.float32).min
    )[:, None, :]

    x = hidden.reshape(N, D)                                            # residual, bf16

    for layer in params["layers"]:
        # 1) RMSNorm + fused QKV projection (wide matmul, row-tiled)
        qkv = ln_qkv(x, layer["ln1"], layer["wqkv"], tm)                # (N, 3*H*dk) bf16
        # layout plumbing: present per-(batch, head) lane-dense (S, dk) slabs
        qkv5 = qkv.reshape(B, S, 3, H, dk).transpose(2, 0, 3, 1, 4)     # (3,B,H,S,dk)
        # 2) attention + wo + residual + RMSNorm2 + FFN + residual, all fused
        x = attention_ffn(
            qkv5, pos_bias, mask_bias, x.reshape(B, S, D),
            layer["wo3"], layer["ln2"], layer["wi"], layer["wo_ff"],
        ).reshape(N, D)

    logits_pad = final_norm_head(
        x,
        params["final_ln"],
        params["cls_dense_w"],
        params["cls_dense_b"],
        params["cls_out_w_pad"],
        params["cls_out_b_pad"],
        tm,
    )                                                                   # (N, 128) f32
    L = params["num_labels"]
    logits = logits_pad[:, :L].reshape(B, S, L)
    # PyTorch: logits.movedim(1, -1) -> (B, num_labels, S)
    return jnp.moveaxis(logits, 1, -1)


def init_params(key, cfg):
    keys = iter(jax.random.split(key, 64))

    def nrm(shape, scale=0.02, dtype=jnp.bfloat16):
        return (scale * jax.random.normal(next(keys), shape)).astype(dtype)

    D = cfg["d_model"]
    H = cfg["num_heads"]
    dk = cfg["d_kv"]
    inner = H * dk
    F = cfg["d_ff"]
    params = dict(cfg)
    params["embed"] = nrm((cfg["vocab"], D), scale=1.0, dtype=jnp.float32)
    params["rel_bias"] = nrm((cfg["num_buckets"], H), dtype=jnp.float32)
    layers = []
    for _ in range(cfg["num_layers"]):
        layers.append(
            dict(
                ln1=jnp.ones((D,), jnp.float32),
                wqkv=nrm((D, 3 * inner)),                     # fused [wq | wk | wv], bf16
                wo3=nrm((inner, D)).reshape(H, dk, D),        # per-head wo slices, bf16
                ln2=jnp.ones((D,), jnp.float32),
                wi=nrm((D, F)),
                wo_ff=nrm((F, D)),
            )
        )
    params["layers"] = layers
    params["final_ln"] = jnp.ones((D,), jnp.float32)
    params["cls_dense_w"] = nrm((D, D))
    params["cls_dense_b"] = jnp.zeros((D,), jnp.float32)
    # out_proj weight/bias padded to a 128-wide lane-dense output block
    lpad = max(128, ((cfg["num_labels"] + 127) // 128) * 128)
    out_w = nrm((D, cfg["num_labels"]))
    params["cls_out_w_pad"] = (
        jnp.zeros((D, lpad), jnp.bfloat16).at[:, : cfg["num_labels"]].set(out_w)
    )
    params["cls_out_b_pad"] = jnp.zeros((lpad,), jnp.float32)
    return params


if __name__ == "__main__":
    cfg = dict(
        vocab=64,
        d_model=32,
        d_kv=16,
        num_heads=2,
        d_ff=64,
        num_layers=2,
        num_buckets=32,
        max_distance=128,
        num_labels=9,  # config.num_labels = 9 from the module
    )
    key = jax.random.PRNGKey(0)
    k_param, k_ids = jax.random.split(key)
    params = init_params(k_param, cfg)

    B, S = 2, 8
    input_ids = jax.random.randint(k_ids, (B, S), 0, cfg["vocab"], dtype=jnp.int32)
    attention_mask = jnp.array(
        [[1, 1, 1, 1, 1, 1, 1, 1], [1, 1, 1, 1, 1, 1, 0, 0]], dtype=jnp.int32
    )

    logits = forward(params, input_ids, attention_mask)
    logits = jax.block_until_ready(logits)

    assert logits.shape == (B, cfg["num_labels"], S), logits.shape
    assert logits.dtype == jnp.float32
    assert bool(jnp.all(jnp.isfinite(logits)))
    print("KERNEL_OK")
</pallas_src>

<mosaic_0001>
module attributes {stable_mosaic.version = 11 : i64} {
  func.func @_probe(%arg0: i32, %arg1: memref<8x128xf32, #tpu.memory_space<vmem>>, %arg2: memref<8x128xf32, #tpu.memory_space<vmem>>) attributes {dimension_semantics = [#tpu.dimension_semantics<arbitrary>], iteration_bounds = array<i64: 2>, scalar_prefetch = 0 : i64, scratch_operands = 0 : i64, tpu.core_type = #tpu.core_type<tc>, window_params = [{pipeline_mode = #tpu.pipeline_mode<synchronous>, transform_indices = @transform_0, window_bounds = array<i64: 8, 128>}, {pipeline_mode = #tpu.pipeline_mode<synchronous>, transform_indices = @transform_1, window_bounds = array<i64: 8, 128>}]} {
    %c0 = arith.constant 0 : index
    %c0_0 = arith.constant 0 : index
    %0 = vector.load %arg1[%c0, %c0_0] : memref<8x128xf32, #tpu.memory_space<vmem>>, vector<8x128xf32>
    %c0_1 = arith.constant 0 : index
    %c0_2 = arith.constant 0 : index
    %1 = vector.load %arg2[%c0_1, %c0_2] : memref<8x128xf32, #tpu.memory_space<vmem>>, vector<8x128xf32>
    tpu.vector_store %arg2[%c0_1, %c0_2], %0 {strides = array<i32>} : memref<8x128xf32, #tpu.memory_space<vmem>>, vector<8x128xf32>,
    return
  }
  func.func @transform_0(%arg0: i32) -> (i32, i32) {
    %c0_i32 = arith.constant 0 : i32
    %c0_i32_0 = arith.constant 0 : i32
    %c0_i32_1 = arith.constant 0 : i32
    return %c0_i32, %c0_i32_0 : i32, i32
  }
  func.func @transform_1(%arg0: i32) -> (i32, i32) {
    %c0_i32 = arith.constant 0 : i32
    %c0_i32_0 = arith.constant 0 : i32
    %c0_i32_1 = arith.constant 0 : i32
    return %c0_i32, %c0_i32_0 : i32, i32
  }
}

module attributes {stable_mosaic.version = 11 : i64} {
  func.func @_ln_qkv_kernel(%arg0: i32, %arg1: memref<16x32xbf16, #tpu.memory_space<vmem>>, %arg2: memref<1x32xf32, #tpu.memory_space<vmem>>, %arg3: memref<32x96xbf16, #tpu.memory_space<vmem>>, %arg4: memref<16x96xbf16, #tpu.memory_space<vmem>>) attributes {dimension_semantics = [#tpu.dimension_semantics<parallel>], iteration_bounds = array<i64: 1>, scalar_prefetch = 0 : i64, scratch_operands = 0 : i64, tpu.core_type = #tpu.core_type<tc>, window_params = [{transform_indices = @transform_0, window_bounds = array<i64: 16, 32>}, {pipeline_mode = #tpu.pipeline_mode<synchronous>, transform_indices = @transform_1, window_bounds = array<i64: 1, 32>}, {pipeline_mode = #tpu.pipeline_mode<synchronous>, transform_indices = @transform_2, window_bounds = array<i64: 32, 96>}, {transform_indices = @transform_3, window_bounds = array<i64: 16, 96>}]} {
    %c0 = arith.constant 0 : index
    %c0_0 = arith.constant 0 : index
    %0 = vector.load %arg1[%c0, %c0_0] : memref<16x32xbf16, #tpu.memory_space<vmem>>, vector<16x32xbf16>
    %1 = arith.extf %0 : vector<16x32xbf16> to vector<16x32xf32>
    %2 = arith.mulf %1, %1 : vector<16x32xf32>
    %cst = arith.constant dense<0.000000e+00> : vector<16xf32>
    %3 = vector.multi_reduction <add>, %2, %cst [1] : vector<16x32xf32> to vector<16xf32>
    %4 = vector.shape_cast %3 : vector<16xf32> to vector<16x1xf32>
    %cst_1 = arith.constant 3.200000e+01 : f32
    %5 = vector.broadcast %cst_1 : f32 to vector<16x1xf32>
    %6 = arith.divf %4, %5 : vector<16x1xf32>
    %cst_2 = arith.constant 9.99999997E-7 : f32
    %7 = vector.broadcast %cst_2 : f32 to vector<16x1xf32>
    %8 = arith.addf %6, %7 : vector<16x1xf32>
    %9 = math.rsqrt %8 : vector<16x1xf32>
    %10 = vector.broadcast %9 : vector<16x1xf32> to vector<16x32xf32>
    %11 = arith.mulf %1, %10 : vector<16x32xf32>
    %c0_3 = arith.constant 0 : index
    %c0_4 = arith.constant 0 : index
    %12 = vector.load %arg2[%c0_3, %c0_4] : memref<1x32xf32, #tpu.memory_space<vmem>>, vector<1x32xf32>
    %13 = vector.broadcast %12 : vector<1x32xf32> to vector<16x32xf32>
    %14 = arith.mulf %11, %13 : vector<16x32xf32>
    %15 = arith.truncf %14 : vector<16x32xf32> to vector<16x32xbf16>
    %c0_5 = arith.constant 0 : index
    %c0_6 = arith.constant 0 : index
    %16 = vector.load %arg3[%c0_5, %c0_6] : memref<32x96xbf16, #tpu.memory_space<vmem>>, vector<32x96xbf16>
    %cst_7 = arith.constant dense<0.000000e+00> : vector<16x96xf32>
    %17 = tpu.matmul %15, %16, %cst_7 {dimension_numbers = #tpu.dot_dimension_numbers<[1], [0], [0], [1], [0, 0, 1, 1], [], []>} : vector<16x32xbf16>, vector<32x96xbf16>, vector<16x96xf32> -> vector<16x96xf32>
    %18 = arith.truncf %17 : vector<16x96xf32> to vector<16x96xbf16>
    %c0_8 = arith.constant 0 : index
    %c0_9 = arith.constant 0 : index
    %19 = vector.load %arg4[%c0_8, %c0_9] : memref<16x96xbf16, #tpu.memory_space<vmem>>, vector<16x96xbf16>
    tpu.vector_store %arg4[%c0_8, %c0_9], %18 {strides = array<i32>} : memref<16x96xbf16, #tpu.memory_space<vmem>>, vector<16x96xbf16>,
    return
  }
  func.func @transform_0(%arg0: i32) -> (i32, i32) {
    %c0_i32 = arith.constant 0 : i32
    %c0_i32_0 = arith.constant 0 : i32
    return %arg0, %c0_i32 : i32, i32
  }
  func.func @transform_1(%arg0: i32) -> (i32, i32) {
    %c0_i32 = arith.constant 0 : i32
    %c0_i32_0 = arith.constant 0 : i32
    %c0_i32_1 = arith.constant 0 : i32
    return %c0_i32, %c0_i32_0 : i32, i32
  }
  func.func @transform_2(%arg0: i32) -> (i32, i32) {
    %c0_i32 = arith.constant 0 : i32
    %c0_i32_0 = arith.constant 0 : i32
    %c0_i32_1 = arith.constant 0 : i32
    return %c0_i32, %c0_i32_0 : i32, i32
  }
  func.func @transform_3(%arg0: i32) -> (i32, i32) {
    %c0_i32 = arith.constant 0 : i32
    %c0_i32_0 = arith.constant 0 : i32
    return %arg0, %c0_i32 : i32, i32
  }
}

</mosaic_0001>

<llo_original>
// kernel: tpu_custom_call.1
$region0: #{tpu_custom_call.1}
  #allocation0 [shape = 'u32[]', space=smem, size = 0x4, offset = 0x4, fixed_abs, tag = 'smem constant byte address 0x4 - core index']
  #allocation1 [shape = 'u32[144,128]{1,0:T(1,128)}', space=vmem, size = 0x12000, scoped, tag = 'internal scratch']
  %s0 = inlined_call_operand.hbm [shape: f32[8,128], index: 0, kind: input, shape index: {}]
  %s1 = inlined_call_operand.hbm [shape: f32[8,128], index: 1, kind: output, shape index: {}]
  %s2 = sld [smem:[#allocation0]]
  $region41: #{tpu_custom_call.1} parent=0
    _
  %s4 = ssub.s32 1, %s2
  %s5 = scalar_select 0, %s4, %s2
  $region1: #{tpu_custom_call.1} parent=0
    #allocation2 [shape = 'u8[4096]{0}', space=vmem, size = 0x1000, scoped, tag = 'input window, operand 0, single buffered']
    #allocation3 [shape = 's32[2]{0}', space=sflag, size = 0x8, scoped, tag = 'scoped memory for tpu_custom_call.1']
    #allocation4 [shape = 's32[2]{0}', space=sflag, size = 0x8, scoped, tag = 'scoped memory for tpu_custom_call.1']
    #allocation5 [shape = 'u8[4096]{0}', space=vmem, size = 0x1000, scoped, tag = 'output window, operand 0, single buffered']
    %6 = vsyncpa [#allocation3], 0
    %7 = vsyncpa [#allocation4], 0
    loop: start=0, step=1, limit=4
    $region2: #{tpu_custom_call.1} parent=1 // loop_pre_header
      _
    $region3: #{tpu_custom_call.1} parent=1 // loop_header
      %s9 = sphi 0, %s13
      %p10 = scmp.ge.s32.totalorder %s9, 4
      %s17 = sphi 0, %s17
      %s19 = sphi 0, %s17
      %s20 = sphi 0, %s19
      %s34 = sphi 0, %s20
      %s38 = sphi 0, %s38
      %s40 = sphi 0, %s38
      %s41 = sphi 0, %s40
      %s55 = sphi 0, %s41
    $region4: #{tpu_custom_call.1} parent=1 // loop_header_branch
      %12 = sbr.rel (%p10) target = $region8
    $region5: #{tpu_custom_call.1} parent=1 // loop_body
      %s14 = ssub.s32 %s9, 1
      %s15 = ssub.s32 %s9, 2
      %s16 = sadd.s32 %s9, 1
      %s18 = sadd.s32 %s17, 1
      %p21 = scmp.eq.s32.totalorder %s9, 1
      %p22 = scmp.ne.s32.totalorder %s17, %s19
      %p23 = scmp.eq.s32.totalorder %s9, 0
      %p24 = por %p22, %p23
      %p25 = scmp.ne.s32.totalorder %s17, %s19
      %p26 = scmp.eq.s32.totalorder %s14, 1
      %p27 = por %p25, %p26
      %p28 = scmp.ne.s32.totalorder %s19, %s20
      %p29 = scmp.eq.s32.totalorder %s14, 0
      %p30 = por %p28, %p29
      %p31 = scmp.ne.s32.totalorder %s19, %s20
      %p32 = scmp.eq.s32.totalorder %s15, 1
      %p33 = por %p31, %p32
      %p35 = scmp.ne.s32.totalorder %s20, %s34
      %p36 = scmp.eq.s32.totalorder %s15, 0
      %p37 = por %p35, %p36
      %s39 = sadd.s32 %s38, 1
      %p42 = scmp.eq.s32.totalorder %s9, 1
      %p43 = scmp.ne.s32.totalorder %s38, %s40
      %p44 = scmp.eq.s32.totalorder %s9, 0
      %p45 = por %p43, %p44
      %p46 = scmp.ne.s32.totalorder %s38, %s40
      %p47 = scmp.eq.s32.totalorder %s14, 1
      %p48 = por %p46, %p47
      %p49 = scmp.ne.s32.totalorder %s40, %s41
      %p50 = scmp.eq.s32.totalorder %s14, 0
      %p51 = por %p49, %p50
      %p52 = scmp.ne.s32.totalorder %s40, %s41
      %p53 = scmp.eq.s32.totalorder %s15, 1
      %p54 = por %p52, %p53
      %p56 = scmp.ne.s32.totalorder %s41, %s55
      %p57 = scmp.eq.s32.totalorder %s15, 0
      %p58 = por %p56, %p57
      %p59 = scmp.le.s32.totalorder 1, %s9
      %p60 = scmp.lt.s32.totalorder %s9, 3
      %p61 = pnand %p59, %p60
      %p62 = pneg %p61
      // Predicated region
      $region9: #{tpu_custom_call.1} parent=5 // pred_check
        _
      $region10: #{tpu_custom_call.1} parent=5 // pred_check_branch
        %64 = sbr.rel (%p61) target = $region12
      $region11: #{tpu_custom_call.1} parent=5 // pred_region
        %s65 = ssub.s32 %s9, 1
        // Predicated region
        $region13: #{tpu_custom_call.1} parent=11 // pred_check
          %p66 = pneg %p30
        $region14: #{tpu_custom_call.1} parent=11 // pred_check_branch
          %68 = sbr.rel (%p66) target = $region16
        $region15: #{tpu_custom_call.1} parent=11 // pred_region
          %s70 = ssub.s32 128, 128
          %71 = vsyncadd [#allocation3], %s70
          %s73 = sshll.u32 [#allocation2], 4
          %s74 = int_to_ptr.vmem [resolvable:$true] %s73
          %76 = dma.hbm_to_vmem [thread:$0]  %s0, 128, %s74, [#allocation3]
        $region16: #{tpu_custom_call.1} parent=11 // pred_fallthru
          _
      $region12: #{tpu_custom_call.1} parent=5 // pred_fallthru
        _
      %p77 = scmp.lt.s32.totalorder %s9, 2
      // Predicated region
      $region17: #{tpu_custom_call.1} parent=5 // pred_check
        %p78 = pneg %p77
      $region18: #{tpu_custom_call.1} parent=5 // pred_check_branch
        %80 = sbr.rel (%p78) target = $region20
      $region19: #{tpu_custom_call.1} parent=5 // pred_region
        _
      $region20: #{tpu_custom_call.1} parent=5 // pred_fallthru
        _
      %p81 = scmp.le.s32.totalorder 1, %s9
      %p82 = scmp.lt.s32.totalorder %s9, 3
      %p83 = pnand %p81, %p82
      %p84 = pneg %p83
      // Predicated region
      $region21: #{tpu_custom_call.1} parent=5 // pred_check
        _
      $region22: #{tpu_custom_call.1} parent=5 // pred_check_branch
        %86 = sbr.rel (%p83) target = $region24
      $region23: #{tpu_custom_call.1} parent=5 // pred_region
        %s87 = ssub.s32 %s9, 1
        // Predicated region
        $region25: #{tpu_custom_call.1} parent=23 // pred_check
          %p88 = pneg %p30
        $region26: #{tpu_custom_call.1} parent=23 // pred_check_branch
          %90 = sbr.rel (%p88) target = $region28
        $region27: #{tpu_custom_call.1} parent=23 // pred_region
          %91 = dma.done [#allocation3], 128
        $region28: #{tpu_custom_call.1} parent=23 // pred_fallthru
          _
        %p92 = pneg %p30
        %p93 = pneg %p27
        %p94 = pneg %p51
        %p95 = pneg %p48
        %v96 = vld [vmem:[#allocation2] sm:$0xff]
        %97 = vst [vmem:[#allocation5] sm:$0xff] %v96
        // Predicated region
        $region29: #{tpu_custom_call.1} parent=23 // pred_check
          %p98 = pneg %p48
        $region30: #{tpu_custom_call.1} parent=23 // pred_check_branch
          %100 = sbr.rel (%p98) target = $region32
        $region31: #{tpu_custom_call.1} parent=23 // pred_region
          %s102 = ssub.s32 128, 128
          %103 = vsyncadd [#allocation4], %s102
          %s105 = sshll.u32 [#allocation5], 4
          %s106 = int_to_ptr.vmem [resolvable:$true] %s105
          %108 = dma.vmem_to_hbm [thread:$0]  %s106, 128, %s1, [#allocation4]
        $region32: #{tpu_custom_call.1} parent=23 // pred_fallthru
          _
        // Predicated region
        $region33: #{tpu_custom_call.1} parent=23 // pred_check
          %p109 = pneg %p48
        $region34: #{tpu_custom_call.1} parent=23 // pred_check_branch
          %111 = sbr.rel (%p109) target = $region36
        $region35: #{tpu_custom_call.1} parent=23 // pred_region
          %112 = dma.done [#allocation4], 128
        $region36: #{tpu_custom_call.1} parent=23 // pred_fallthru
          _
      $region24: #{tpu_custom_call.1} parent=5 // pred_fallthru
        _
      %p113 = scmp.le.s32.totalorder 2, %s9
      // Predicated region
      $region37: #{tpu_custom_call.1} parent=5 // pred_check
        %p114 = pneg %p113
      $region38: #{tpu_custom_call.1} parent=5 // pred_check_branch
        %116 = sbr.rel (%p114) target = $region40
      $region39: #{tpu_custom_call.1} parent=5 // pred_region
        %s117 = ssub.s32 %s9, 2
      $region40: #{tpu_custom_call.1} parent=5 // pred_fallthru
        _
    $region6: #{tpu_custom_call.1} parent=1 // loop_footer
      %s13 = sadd.s32 1, %s9
    $region7: #{tpu_custom_call.1} parent=1 // loop_footer_branch
      %8 = sbr.rel target = $region3
    $region8: #{tpu_custom_call.1} parent=1 // loop_exit
      _
    %118 = vsyncpa [#allocation3], 1
    %s119 = scalar_lea.sflag [#allocation3], 1
    %120 = vsyncpa %s119, 1
    %121 = vsyncpa [#allocation4], 1
    %s122 = scalar_lea.sflag [#allocation4], 1
    %123 = vsyncpa %s122, 1

// kernel: tpu_custom_call.1
$region0: #{tpu_custom_call.1}
  #allocation0 [shape = 'u32[]', space=smem, size = 0x4, offset = 0x4, fixed_abs, tag = 'smem constant byte address 0x4 - core index']
  #allocation1 [shape = 'u32[144,128]{1,0:T(1,128)}', space=vmem, size = 0x12000, scoped, tag = 'internal scratch']
  %s0 = inlined_call_operand.hbm [shape: bf16[16,32], index: 0, kind: input, shape index: {}]
  %s1 = inlined_call_operand.hbm [shape: f32[1,32], index: 1, kind: input, shape index: {}]
  %s2 = inlined_call_operand.hbm [shape: bf16[32,96], index: 2, kind: input, shape index: {}]
  %s3 = inlined_call_operand.hbm [shape: bf16[16,96], index: 3, kind: output, shape index: {}]
  %s4 = sld [smem:[#allocation0]]
  $region34: #{tpu_custom_call.1} parent=0
    _
  %s6 = ssub.s32 1, %s4
  %s7 = scalar_select 0, %s6, %s4
  $region1: #{tpu_custom_call.1} parent=0
    #allocation2 [shape = 'u8[4096]{0}', space=vmem, size = 0x1000, scoped, tag = 'input window, operand 0, single buffered']
    #allocation3 [shape = 's32[1]{0}', space=sflag, size = 0x4, scoped, tag = 'scoped memory for tpu_custom_call.1']
    #allocation4 [shape = 's32[1]{0}', space=sflag, size = 0x4, scoped, tag = 'scoped memory for tpu_custom_call.1']
    #allocation5 [shape = 'u8[512]{0}', space=vmem, size = 0x400, scoped, tag = 'input window, operand 1, single buffered']
    #allocation6 [shape = 's32[1]{0}', space=sflag, size = 0x4, scoped, tag = 'scoped memory for tpu_custom_call.1']
    #allocation7 [shape = 'u8[8192]{0}', space=vmem, size = 0x2000, scoped, tag = 'input window, operand 2, single buffered']
    #allocation8 [shape = 'u8[4096]{0}', space=vmem, size = 0x1000, scoped, tag = 'output window, operand 0, single buffered']
    %8 = vsyncpa [#allocation3], 0
    %9 = vsyncpa [#allocation6], 0
    %10 = vsyncpa [#allocation4], 0
    // Predicated region
    $region2: #{tpu_custom_call.1} parent=1 // pred_check
      _
    $region3: #{tpu_custom_call.1} parent=1 // pred_check_branch
      %12 = sbr.rel (0) target = $region5
    $region4: #{tpu_custom_call.1} parent=1 // pred_region
      %s14 = ssub.s32 128, 128
      %15 = vsyncadd [#allocation3], %s14
      %s16 = sshll.u32 [#allocation2], 4
      %s17 = int_to_ptr.vmem [resolvable:$true] %s16
      %22 = dma.hbm_to_vmem [thread:$0]  %s0, 128, %s17, [#allocation3], 64, 64, 4
    $region5: #{tpu_custom_call.1} parent=1 // pred_fallthru
      _
    // Predicated region
    $region6: #{tpu_custom_call.1} parent=1 // pred_check
      _
    $region7: #{tpu_custom_call.1} parent=1 // pred_check_branch
      %24 = sbr.rel (0) target = $region9
    $region8: #{tpu_custom_call.1} parent=1 // pred_region
      %s26 = ssub.s32 16, 16
      %27 = vsyncadd [#allocation6], %s26
      %s29 = sshll.u32 [#allocation5], 4
      %s30 = int_to_ptr.vmem [resolvable:$true] %s29
      %32 = dma.hbm_to_vmem [thread:$0]  %s1, 16, %s30, [#allocation6]
    $region9: #{tpu_custom_call.1} parent=1 // pred_fallthru
      _
    // Predicated region
    $region10: #{tpu_custom_call.1} parent=1 // pred_check
      _
    $region11: #{tpu_custom_call.1} parent=1 // pred_check_branch
      %34 = sbr.rel (0) target = $region13
    $region12: #{tpu_custom_call.1} parent=1 // pred_region
      %s36 = ssub.s32 256, 256
      %37 = vsyncadd [#allocation6], %s36
      %s38 = sshll.u32 [#allocation7], 4
      %s39 = int_to_ptr.vmem [resolvable:$true] %s38
      %44 = dma.hbm_to_vmem [thread:$0]  %s2, 256, %s39, [#allocation6], 64, 64, 4
    $region13: #{tpu_custom_call.1} parent=1 // pred_fallthru
      _
    // Predicated region
    $region14: #{tpu_custom_call.1} parent=1 // pred_check
      _
    $region15: #{tpu_custom_call.1} parent=1 // pred_check_branch
      %46 = sbr.rel (0) target = $region17
    $region16: #{tpu_custom_call.1} parent=1 // pred_region
      %47 = dma.done [#allocation3], 128
    $region17: #{tpu_custom_call.1} parent=1 // pred_fallthru
      _
    // Predicated region
    $region18: #{tpu_custom_call.1} parent=1 // pred_check
      _
    $region19: #{tpu_custom_call.1} parent=1 // pred_check_branch
      %49 = sbr.rel (0) target = $region21
    $region20: #{tpu_custom_call.1} parent=1 // pred_region
      %50 = dma.done [#allocation6], 16
    $region21: #{tpu_custom_call.1} parent=1 // pred_fallthru
      _
    // Predicated region
    $region22: #{tpu_custom_call.1} parent=1 // pred_check
      _
    $region23: #{tpu_custom_call.1} parent=1 // pred_check_branch
      %52 = sbr.rel (0) target = $region25
    $region24: #{tpu_custom_call.1} parent=1 // pred_region
      %53 = dma.done [#allocation6], 256
    $region25: #{tpu_custom_call.1} parent=1 // pred_fallthru
      _
    %v55 = vld [vmem:[#allocation2] sm:$0xf]
    %v56 = vld [vmem:[#allocation2 + $0x4] sm:$0xf]
    %v57 = vunpack.c.l.bf16 %v55
    %v58 = vunpack.c.l.bf16 %v56
    %v59 = vmul.f32 %v57, %v57
    %v60 = vmul.f32 %v58, %v58
    %vm61 = vcmask 261120
    %v62 = vsel %vm61, %v59, 0.0
    %63 = vadd.xlane.f32.xlu0 %v62
    %v64 = vpop.xlane.xlu0 %63
    %v65 = vsel %vm61, %v60, 0.0
    %66 = vadd.xlane.f32.xlu0 %v65
    %v67 = vpop.xlane.xlu0 %66
    %v68 = vrcp.pop 32.0
    %v69 = vmul.f32 %v64, %v68
    %v70 = vmul.f32 %v67, %v68
    %v71 = vadd.f32 %v69, 1e-06
    %v72 = vadd.f32 %v70, 1e-06
    %v73 = vrsqrt.pop %v71
    %v74 = vrsqrt.pop %v72
    %v75 = vmul.f32 %v57, %v73
    %v76 = vmul.f32 %v58, %v74
    %v77 = vld [vmem:[#allocation5] sm:$0x1]
    %v79 = vlaneseq
    %v80 = vshrl.u32 %v79, 7
    %v81 = vsub.s32 0, %v80
    %v82 = vrot.slane %v77, %v81
    %v84 = vmul.f32 %v75, %v82
    %v85 = vmul.f32 %v76, %v82
    %v86 = vpack.c.bf16 %v85, %v84
    %v87 = vld [vmem:[#allocation7] sm:$0xf]
    %v88 = vld [vmem:[#allocation7 + $0x4] sm:$0xf]
    %v89 = vld [vmem:[#allocation7 + $0x8] sm:$0xf]
    %v90 = vld [vmem:[#allocation7 + $0xc] sm:$0xf]
    %v95 = vunpack.c.l.b16 %v87
    %v96 = vunpack.c.l.b16 %v88
    %v97 = vunpack.c.l.b16 %v89
    %v98 = vunpack.c.l.b16 %v90
    %v99 = vpack.c.b16 %v96, %v95
    %v100 = vpack.c.b16 %v98, %v97
    %v104 = vsel %vm61, %v86, 0
    %106 = vmatprep.subr.bf16.mxu0 0
    %107 = vmatpush1.bf16.msra.mxu0 %v99
    %108 = vmatprep.subr.bf16.mxu0 0
    %109 = vmatpush1.bf16.msra.mxu0 %v100
    %110 = vmatprep.subr.bf16.mxu0 0
    %111 = vmatpush1.bf16.msra.mxu0 0
    %112 = vmatprep.subr.bf16.mxu0 0
    %113 = vmatpush1.bf16.msra.mxu0 0
    %114 = vmatprep.subr.bf16.mxu0 0
    %115 = vmatpush1.bf16.msra.mxu0 0
    %116 = vmatprep.subr.bf16.mxu0 0
    %117 = vmatpush1.bf16.msra.mxu0 0
    %118 = vmatprep.subr.bf16.mxu0 0
    %119 = vmatpush1.bf16.msra.mxu0 0
    %120 = vmatprep.subr.bf16.mxu0 0
    %121 = vmatpush1.bf16.msra.mxu0 0
    %122 = vmatprep.subr.bf16.mxu0 0
    %123 = vmatpush1.bf16.msra.mxu0 0
    %124 = vmatprep.subr.bf16.mxu0 0
    %125 = vmatpush1.bf16.msra.mxu0 0
    %126 = vmatprep.subr.bf16.mxu0 0
    %127 = vmatpush1.bf16.msra.mxu0 0
    %128 = vmatprep.subr.bf16.mxu0 0
    %129 = vmatpush1.bf16.msra.mxu0 0
    %130 = vmatprep.subr.bf16.mxu0 0
    %131 = vmatpush1.bf16.msra.mxu0 0
    %132 = vmatprep.subr.bf16.mxu0 0
    %133 = vmatpush1.bf16.msra.mxu0 0
    %134 = vmatprep.subr.bf16.mxu0 0
    %135 = vmatpush1.bf16.msra.mxu0 0
    %136 = vmatprep.subr.bf16.mxu0 0
    %137 = vmatpush1.bf16.msra.mxu0 0
    %138 = vmatprep.mubr.bf16.mxu0 0
    %139 = vmatmul.mubr.bf16.gmra.mrb[0].mxu0 %v104
    %v140 = vpop.f32.mrb[0].mxu0
    %v141 = vadd.f32 0.0, %v140
    %v142 = vpop.f32.mrb[0].mxu0
    %v143 = vpop.f32.mrb[0].mxu0
    %v144 = vadd.f32 0.0, %v143
    %v145 = vpop.f32.mrb[0].mxu0
    %146 = vdwg.mxu0
    %v147 = vpack.c.bf16 %v144, %v141
    %v149 = vunpack.c.l.b16 %v147
    %v150 = vunpack.c.h.b16 %v147
    %v151 = vpack.c.b16 %v149, %v149
    %v152 = vpack.c.b16 %v150, %v150
    %vm155 = vcmask 781312
    %156 = vst.msk [vmem:[#allocation8] sm:$0xf] %vm155, %v151
    %157 = vst.msk [vmem:[#allocation8 + $0x4] sm:$0xf] %vm155, %v152
    // Predicated region
    $region26: #{tpu_custom_call.1} parent=1 // pred_check
      _
    $region27: #{tpu_custom_call.1} parent=1 // pred_check_branch
      %159 = sbr.rel (0) target = $region29
    $region28: #{tpu_custom_call.1} parent=1 // pred_region
      %s161 = ssub.s32 128, 128
      %162 = vsyncadd [#allocation4], %s161
      %s163 = sshll.u32 [#allocation8], 4
      %s164 = int_to_ptr.vmem [resolvable:$true] %s163
      %169 = dma.vmem_to_hbm [thread:$0]  %s164, 128, %s3, [#allocation4], 64, 64, 4
    $region29: #{tpu_custom_call.1} parent=1 // pred_fallthru
      _
    // Predicated region
    $region30: #{tpu_custom_call.1} parent=1 // pred_check
      _
    $region31: #{tpu_custom_call.1} parent=1 // pred_check_branch
      %171 = sbr.rel (0) target = $region33
    $region32: #{tpu_custom_call.1} parent=1 // pred_region
      %172 = dma.done [#allocation4], 128
    $region33: #{tpu_custom_call.1} parent=1 // pred_fallthru
      _
    %173 = vsyncpa [#allocation3], 1
    %174 = vsyncpa [#allocation6], 1
    %175 = vsyncpa [#allocation4], 1

</llo_original>
